<compile_context>
chip_gen: v5e
topology: v5e:2x2
jax: 0.10.0
libtpu: 0.0.40
codegen_flags: <defaults>
</compile_context>

<pallas_src>
import functools
import math

import jax
import jax.numpy as jnp
import numpy as np
from jax import lax
from jax.experimental import pallas as pl
from jax.experimental.pallas import tpu as pltpu

NO_LORA = -100


def _dynamic_kernel(map_ref, in_ref, out_ref, *, scale, r, g_per_step, max_block):
    """map_ref: (B,) int32 in SMEM (scalar prefetch).
    in_ref:  (R, D) resident in VMEM.
    out_ref: (g_per_step * r, D) output slab for this grid step."""
    i = pl.program_id(0)

    def body(g, carry):
        block_id = map_ref[i * g_per_step + g]
        # Valid ids are [0, max_block); NO_LORA and any out-of-range id are
        # zeroed.  Clamp the gather start so we never read OOB VMEM.
        valid = jnp.logical_and(block_id >= 0, block_id < max_block)
        safe_id = jnp.where(valid, block_id, 0)
        start = pl.multiple_of(safe_id * r, r)
        tile = in_ref[pl.ds(start, r), :].astype(jnp.float32)
        eff = jnp.where(valid, jnp.float32(scale), jnp.float32(0.0))
        off = pl.multiple_of(g * r, r)
        out_ref[pl.ds(off, r), :] = (tile * eff).astype(out_ref.dtype)
        return carry

    # Bounded, modestly-unrolled loop: keeps vreg live ranges and code size
    # flat even when g_per_step is in the hundreds (kernel is writeback-bound,
    # so issue-rate is not the bottleneck).
    lax.fori_loop(0, g_per_step, body, None, unroll=min(8, g_per_step))


def _choose_grid(B, r, D, itemsize):
    """Pick (NG, G) with NG * G == B (no padded tail, no post-kernel slice).

    Targets a ~4 MiB per-step output slab (good middle ground: ~<10% per-step
    overhead on v6e/v7x, comfortably inside v5e's 16 MiB scoped-VMEM default
    with double-buffering), and guarantees NG >= 2 when B >= 2 so v7x's two
    TensorCores both get work on the "parallel" grid axis."""
    row_bytes = r * D * itemsize            # bytes per mapping entry
    total_bytes = B * row_bytes
    TARGET_SLAB = 4 << 20                   # ~4 MiB per-step output slab
    MAX_SLAB = 16 << 20                     # hard cap (2x slab must fit VMEM)

    desired_ng = max(2 if B >= 2 else 1, -(-total_bytes // TARGET_SLAB))
    divisors = [d for d in range(1, B + 1) if B % d == 0]
    ok = [d for d in divisors if (B // d) * row_bytes <= MAX_SLAB] or [B]
    # Closest divisor to the desired step count; ties -> more parallelism.
    ng = min(ok, key=lambda d: (abs(d - desired_ng), -d))
    return ng, B // ng


def dynamic_forward(inputs, block_mapping, *, maximum_rank, num_rank_per_block):
    """inputs: (maximum_rank, D); block_mapping: (B,) int32 of block ids / NO_LORA.

    Returns (B, num_rank_per_block, D): gathered (or zero) row-blocks scaled by
    sqrt(maximum_rank / num_rank_per_block)."""
    assert maximum_rank % num_rank_per_block == 0
    R, D = inputs.shape
    assert R == maximum_rank
    r = num_rank_per_block
    B = int(block_mapping.shape[0])
    max_block = maximum_rank // num_rank_per_block
    scale = math.sqrt(maximum_rank / num_rank_per_block)

    itemsize = jnp.dtype(inputs.dtype).itemsize
    # Dtype-aware packed-sublane tile: 8 rows for 32-bit, 16 for bf16, 32 for i8.
    sublane = (8 * 4) // itemsize
    assert r % sublane == 0, (
        f"num_rank_per_block must be a multiple of {sublane} for dtype {inputs.dtype}")
    assert D % 128 == 0, "feature dim must be a multiple of 128 (lane tiling)"

    NG, G = _choose_grid(B, r, D, itemsize)
    assert NG * G == B

    slab_bytes = G * r * D * itemsize
    in_bytes = R * D * itemsize
    # Budget: 2x output slab (double buffer) + 2x resident input + margin.
    vmem_need = 2 * slab_bytes + 2 * in_bytes + (2 << 20)
    vmem_limit = int(min(max(vmem_need, 16 << 20), 48 << 20))

    mapping_i32 = block_mapping.astype(jnp.int32)

    kernel = functools.partial(
        _dynamic_kernel, scale=scale, r=r, g_per_step=G, max_block=max_block)

    grid_spec = pltpu.PrefetchScalarGridSpec(
        num_scalar_prefetch=1,
        grid=(NG,),
        in_specs=[
            # Entire `inputs` array resident in VMEM (same block every step).
            pl.BlockSpec((R, D), lambda i, m: (0, 0)),
        ],
        # Lane/sublane-dense flat output slab: (G*r, D) per grid step.
        out_specs=pl.BlockSpec((G * r, D), lambda i, m: (i, 0)),
    )

    cost = pl.CostEstimate(
        flops=B * r * D,
        transcendentals=0,
        bytes_accessed=B * r * D * itemsize + in_bytes + B * 4,
    )

    flat = pl.pallas_call(
        kernel,
        out_shape=jax.ShapeDtypeStruct((B * r, D), inputs.dtype),
        grid_spec=grid_spec,
        compiler_params=pltpu.CompilerParams(
            # Groups are independent -> shard steps across TensorCores on v7x.
            dimension_semantics=("parallel",),
            vmem_limit_bytes=vmem_limit,
        ),
        cost_estimate=cost,
    )(mapping_i32, inputs)

    # NG * G == B, so this reshape is metadata-only (no HBM copy).
    return flat.reshape(B, r, D)


def dynamic_forward_ref(inputs, block_mapping, *, maximum_rank, num_rank_per_block):
    r = num_rank_per_block
    blocks = []
    for bid in np.asarray(block_mapping):
        if bid == NO_LORA:
            blocks.append(jnp.zeros((r, inputs.shape[1]), inputs.dtype))
        else:
            blocks.append(inputs[bid * r:(bid + 1) * r])
    return jnp.stack(blocks, 0) * math.sqrt(maximum_rank / num_rank_per_block)


if __name__ == "__main__":
    # Deterministic synthetic setup (no checkpoint load).
    maximum_rank = 32
    num_rank_per_block = 8        # maximum_block = 4
    D = 128                       # feature dim of `inputs` (inputs.shape[1])

    key = jax.random.PRNGKey(0)
    inputs = jax.random.normal(key, (maximum_rank, D), dtype=jnp.float32)

    # Module-level LORA_BLOCK_MAPPING analogue (includes NO_LORA entries).
    block_mapping = jnp.array([0, 2, NO_LORA, 1, 3, NO_LORA, 0, 2], dtype=jnp.int32)

    out = dynamic_forward(
        inputs, block_mapping,
        maximum_rank=maximum_rank, num_rank_per_block=num_rank_per_block,
    )
    out = jax.block_until_ready(out)

    ref = dynamic_forward_ref(
        inputs, block_mapping,
        maximum_rank=maximum_rank, num_rank_per_block=num_rank_per_block,
    )
    np.testing.assert_allclose(np.asarray(out), np.asarray(ref), rtol=1e-6, atol=1e-6)

    print("KERNEL_OK")
</pallas_src>

<mosaic_0001>
module attributes {stable_mosaic.version = 11 : i64} {
  func.func @_dynamic_kernel(%arg0: i32, %arg1: memref<8xi32, #tpu.memory_space<smem>>, %arg2: memref<32x128xf32, #tpu.memory_space<vmem>>, %arg3: memref<32x128xf32, #tpu.memory_space<vmem>>) attributes {dimension_semantics = [#tpu.dimension_semantics<parallel>], iteration_bounds = array<i64: 2>, scalar_prefetch = 1 : i64, scratch_operands = 0 : i64, tpu.core_type = #tpu.core_type<tc>, window_params = [{pipeline_mode = #tpu.pipeline_mode<synchronous>, transform_indices = @transform_0, window_bounds = array<i64: 32, 128>}, {transform_indices = @transform_1, window_bounds = array<i64: 32, 128>}]} {
    %c0_i32 = arith.constant 0 : i32
    %c4_i32 = arith.constant 4 : i32
    %0 = arith.muli %arg0, %c4_i32 : i32
    %1 = arith.addi %0, %c0_i32 : i32
    %2 = arith.index_cast %1 : i32 to index
    %3 = memref.load %arg1[%2] : memref<8xi32, #tpu.memory_space<smem>>
    %c0_i32_0 = arith.constant 0 : i32
    %4 = arith.cmpi sge, %3, %c0_i32_0 : i32
    %c4_i32_1 = arith.constant 4 : i32
    %5 = arith.cmpi slt, %3, %c4_i32_1 : i32
    %6 = arith.andi %4, %5 : i1
    %c0_i32_2 = arith.constant 0 : i32
    %7 = arith.select %6, %3, %c0_i32_2 : i32
    %c8_i32 = arith.constant 8 : i32
    %8 = arith.muli %7, %c8_i32 : i32
    %9 = tpu.assume_multiple %8, 8 : i32
    %10 = arith.index_cast %9 : i32 to index
    %c0 = arith.constant 0 : index
    %11 = vector.load %arg2[%10, %c0] : memref<32x128xf32, #tpu.memory_space<vmem>>, vector<8x128xf32>
    %cst = arith.constant 2.000000e+00 : f32
    %cst_3 = arith.constant 0.000000e+00 : f32
    %12 = arith.select %6, %cst, %cst_3 : f32
    %c8_i32_4 = arith.constant 8 : i32
    %13 = arith.muli %c0_i32, %c8_i32_4 : i32
    %14 = tpu.assume_multiple %13, 8 : i32
    %15 = vector.broadcast %12 : f32 to vector<8x128xf32>
    %16 = arith.mulf %11, %15 : vector<8x128xf32>
    %17 = arith.index_cast %14 : i32 to index
    %c0_5 = arith.constant 0 : index
    %18 = vector.load %arg3[%17, %c0_5] : memref<32x128xf32, #tpu.memory_space<vmem>>, vector<8x128xf32>
    tpu.vector_store %arg3[%17, %c0_5], %16 {strides = array<i32>} : memref<32x128xf32, #tpu.memory_space<vmem>>, vector<8x128xf32>,
    %c1_i32 = arith.constant 1 : i32
    %c4_i32_6 = arith.constant 4 : i32
    %19 = arith.muli %arg0, %c4_i32_6 : i32
    %20 = arith.addi %19, %c1_i32 : i32
    %21 = arith.index_cast %20 : i32 to index
    %22 = memref.load %arg1[%21] : memref<8xi32, #tpu.memory_space<smem>>
    %c0_i32_7 = arith.constant 0 : i32
    %23 = arith.cmpi sge, %22, %c0_i32_7 : i32
    %c4_i32_8 = arith.constant 4 : i32
    %24 = arith.cmpi slt, %22, %c4_i32_8 : i32
    %25 = arith.andi %23, %24 : i1
    %c0_i32_9 = arith.constant 0 : i32
    %26 = arith.select %25, %22, %c0_i32_9 : i32
    %c8_i32_10 = arith.constant 8 : i32
    %27 = arith.muli %26, %c8_i32_10 : i32
    %28 = tpu.assume_multiple %27, 8 : i32
    %29 = arith.index_cast %28 : i32 to index
    %c0_11 = arith.constant 0 : index
    %30 = vector.load %arg2[%29, %c0_11] : memref<32x128xf32, #tpu.memory_space<vmem>>, vector<8x128xf32>
    %cst_12 = arith.constant 2.000000e+00 : f32
    %cst_13 = arith.constant 0.000000e+00 : f32
    %31 = arith.select %25, %cst_12, %cst_13 : f32
    %c8_i32_14 = arith.constant 8 : i32
    %32 = arith.muli %c1_i32, %c8_i32_14 : i32
    %33 = tpu.assume_multiple %32, 8 : i32
    %34 = vector.broadcast %31 : f32 to vector<8x128xf32>
    %35 = arith.mulf %30, %34 : vector<8x128xf32>
    %36 = arith.index_cast %33 : i32 to index
    %c0_15 = arith.constant 0 : index
    %37 = vector.load %arg3[%36, %c0_15] : memref<32x128xf32, #tpu.memory_space<vmem>>, vector<8x128xf32>
    tpu.vector_store %arg3[%36, %c0_15], %35 {strides = array<i32>} : memref<32x128xf32, #tpu.memory_space<vmem>>, vector<8x128xf32>,
    %c2_i32 = arith.constant 2 : i32
    %c4_i32_16 = arith.constant 4 : i32
    %38 = arith.muli %arg0, %c4_i32_16 : i32
    %39 = arith.addi %38, %c2_i32 : i32
    %40 = arith.index_cast %39 : i32 to index
    %41 = memref.load %arg1[%40] : memref<8xi32, #tpu.memory_space<smem>>
    %c0_i32_17 = arith.constant 0 : i32
    %42 = arith.cmpi sge, %41, %c0_i32_17 : i32
    %c4_i32_18 = arith.constant 4 : i32
    %43 = arith.cmpi slt, %41, %c4_i32_18 : i32
    %44 = arith.andi %42, %43 : i1
    %c0_i32_19 = arith.constant 0 : i32
    %45 = arith.select %44, %41, %c0_i32_19 : i32
    %c8_i32_20 = arith.constant 8 : i32
    %46 = arith.muli %45, %c8_i32_20 : i32
    %47 = tpu.assume_multiple %46, 8 : i32
    %48 = arith.index_cast %47 : i32 to index
    %c0_21 = arith.constant 0 : index
    %49 = vector.load %arg2[%48, %c0_21] : memref<32x128xf32, #tpu.memory_space<vmem>>, vector<8x128xf32>
    %cst_22 = arith.constant 2.000000e+00 : f32
    %cst_23 = arith.constant 0.000000e+00 : f32
    %50 = arith.select %44, %cst_22, %cst_23 : f32
    %c8_i32_24 = arith.constant 8 : i32
    %51 = arith.muli %c2_i32, %c8_i32_24 : i32
    %52 = tpu.assume_multiple %51, 8 : i32
    %53 = vector.broadcast %50 : f32 to vector<8x128xf32>
    %54 = arith.mulf %49, %53 : vector<8x128xf32>
    %55 = arith.index_cast %52 : i32 to index
    %c0_25 = arith.constant 0 : index
    %56 = vector.load %arg3[%55, %c0_25] : memref<32x128xf32, #tpu.memory_space<vmem>>, vector<8x128xf32>
    tpu.vector_store %arg3[%55, %c0_25], %54 {strides = array<i32>} : memref<32x128xf32, #tpu.memory_space<vmem>>, vector<8x128xf32>,
    %c3_i32 = arith.constant 3 : i32
    %c4_i32_26 = arith.constant 4 : i32
    %57 = arith.muli %arg0, %c4_i32_26 : i32
    %58 = arith.addi %57, %c3_i32 : i32
    %59 = arith.index_cast %58 : i32 to index
    %60 = memref.load %arg1[%59] : memref<8xi32, #tpu.memory_space<smem>>
    %c0_i32_27 = arith.constant 0 : i32
    %61 = arith.cmpi sge, %60, %c0_i32_27 : i32
    %c4_i32_28 = arith.constant 4 : i32
    %62 = arith.cmpi slt, %60, %c4_i32_28 : i32
    %63 = arith.andi %61, %62 : i1
    %c0_i32_29 = arith.constant 0 : i32
    %64 = arith.select %63, %60, %c0_i32_29 : i32
    %c8_i32_30 = arith.constant 8 : i32
    %65 = arith.muli %64, %c8_i32_30 : i32
    %66 = tpu.assume_multiple %65, 8 : i32
    %67 = arith.index_cast %66 : i32 to index
    %c0_31 = arith.constant 0 : index
    %68 = vector.load %arg2[%67, %c0_31] : memref<32x128xf32, #tpu.memory_space<vmem>>, vector<8x128xf32>
    %cst_32 = arith.constant 2.000000e+00 : f32
    %cst_33 = arith.constant 0.000000e+00 : f32
    %69 = arith.select %63, %cst_32, %cst_33 : f32
    %c8_i32_34 = arith.constant 8 : i32
    %70 = arith.muli %c3_i32, %c8_i32_34 : i32
    %71 = tpu.assume_multiple %70, 8 : i32
    %72 = vector.broadcast %69 : f32 to vector<8x128xf32>
    %73 = arith.mulf %68, %72 : vector<8x128xf32>
    %74 = arith.index_cast %71 : i32 to index
    %c0_35 = arith.constant 0 : index
    %75 = vector.load %arg3[%74, %c0_35] : memref<32x128xf32, #tpu.memory_space<vmem>>, vector<8x128xf32>
    tpu.vector_store %arg3[%74, %c0_35], %73 {strides = array<i32>} : memref<32x128xf32, #tpu.memory_space<vmem>>, vector<8x128xf32>,
    %c4_i32_36 = arith.constant 4 : i32
    return
  }
  func.func @transform_0(%arg0: i32, %arg1: memref<8xi32, #tpu.memory_space<smem>>) -> (i32, i32) {
    %c0_i32 = arith.constant 0 : i32
    %c0_i32_0 = arith.constant 0 : i32
    %c0_i32_1 = arith.constant 0 : i32
    return %c0_i32, %c0_i32_0 : i32, i32
  }
  func.func @transform_1(%arg0: i32, %arg1: memref<8xi32, #tpu.memory_space<smem>>) -> (i32, i32) {
    %c0_i32 = arith.constant 0 : i32
    %c0_i32_0 = arith.constant 0 : i32
    return %arg0, %c0_i32 : i32, i32
  }
}

</mosaic_0001>

<llo_original>
// kernel: tpu_custom_call.1
$region0: #{tpu_custom_call.1}
  #allocation0 [shape = 'u32[]', space=smem, size = 0x4, offset = 0x4, fixed_abs, tag = 'smem constant byte address 0x4 - core index']
  #allocation1 [shape = 'u32[72,128]{1,0:T(1,128)}', space=vmem, size = 0x9000, scoped, tag = 'internal scratch']
  #allocation2 [shape = 's32[1]{0}', space=sflag, size = 0x4, scoped, tag = 'scoped memory for tpu_custom_call.1']
  #allocation3 [shape = 'u8[512]{0}', space=smem, size = 0x200, scoped, tag = 'prefetched SMEM operand 0']
  %s0 = inlined_call_operand.hbm [shape: s32[8], index: 0, kind: input, shape index: {}]
  %s1 = inlined_call_operand.hbm [shape: f32[32,128], index: 1, kind: input, shape index: {}]
  %s2 = inlined_call_operand.hbm [shape: f32[64,128], index: 2, kind: output, shape index: {}]
  %s3 = sld [smem:[#allocation0]]
  $region41: #{tpu_custom_call.1} parent=0
    _
  %s5 = ssub.s32 1, %s3
  %s6 = scalar_select 0, %s5, %s3
  %s8 = sshll.u32 %s0, 4
  %s9 = int_to_ptr.hbm [resolvable:$true] %s8
  %11 = dma.hbm_to_smem %s9, 16, [#allocation3], [#allocation2]
  %13 = dma.done [#allocation2], 16
  %14 = sfence
  $region1: #{tpu_custom_call.1} parent=0
    #allocation4 [shape = 'u8[16384]{0}', space=vmem, size = 0x4000, scoped, tag = 'input window, operand 1, single buffered']
    #allocation5 [shape = 's32[2]{0}', space=sflag, size = 0x8, scoped, tag = 'scoped memory for tpu_custom_call.1']
    #allocation6 [shape = 's32[2]{0}', space=sflag, size = 0x8, scoped, tag = 'scoped memory for tpu_custom_call.1']
    #allocation7 [shape = 'u8[32768]{0}', space=vmem, size = 0x8000, scoped, tag = 'output window, operand 0']
    %15 = vsyncpa [#allocation5], 0
    %16 = vsyncpa [#allocation6], 0
    %s17 = scalar_lea.sflag [#allocation6], 1
    %18 = vsyncpa %s17, 0
    loop: start=0, step=1, limit=4
    $region2: #{tpu_custom_call.1} parent=1 // loop_pre_header
      _
    $region3: #{tpu_custom_call.1} parent=1 // loop_header
      %s20 = sphi 0, %s24
      %p21 = scmp.ge.s32.totalorder %s20, 4
      %s28 = sphi 0, %s28
      %s30 = sphi 0, %s28
      %s31 = sphi 0, %s30
      %s45 = sphi 0, %s31
      %s51 = sphi 0, %s53
      %s54 = sphi 0, %s51
      %s55 = sphi 0, %s54
      %s71 = sphi 0, %s55
    $region4: #{tpu_custom_call.1} parent=1 // loop_header_branch
      %23 = sbr.rel (%p21) target = $region8
    $region5: #{tpu_custom_call.1} parent=1 // loop_body
      %s25 = ssub.s32 %s20, 1
      %s26 = ssub.s32 %s20, 2
      %s27 = sadd.s32 %s20, 1
      %s29 = sadd.s32 %s28, 1
      %p32 = scmp.eq.s32.totalorder %s20, 1
      %p33 = scmp.ne.s32.totalorder %s28, %s30
      %p34 = scmp.eq.s32.totalorder %s20, 0
      %p35 = por %p33, %p34
      %p36 = scmp.ne.s32.totalorder %s28, %s30
      %p37 = scmp.eq.s32.totalorder %s25, 1
      %p38 = por %p36, %p37
      %p39 = scmp.ne.s32.totalorder %s30, %s31
      %p40 = scmp.eq.s32.totalorder %s25, 0
      %p41 = por %p39, %p40
      %p42 = scmp.ne.s32.totalorder %s30, %s31
      %p43 = scmp.eq.s32.totalorder %s26, 1
      %p44 = por %p42, %p43
      %p46 = scmp.ne.s32.totalorder %s31, %s45
      %p47 = scmp.eq.s32.totalorder %s26, 0
      %p48 = por %p46, %p47
      %s49 = ssub.s32 %s20, %s27
      %p50 = scmp.eq.s32.totalorder %s49, 0
      %s52 = sadd.s32 %s51, 1
      %s53 = scalar_select %p50, %s51, %s52
      %p56 = pneg %p50
      %p57 = scmp.eq.s32.totalorder %s20, 1
      %p58 = por %p56, %p57
      %p59 = scmp.ne.s32.totalorder %s51, %s54
      %p60 = scmp.eq.s32.totalorder %s20, 0
      %p61 = por %p59, %p60
      %p62 = scmp.ne.s32.totalorder %s51, %s54
      %p63 = scmp.eq.s32.totalorder %s25, 1
      %p64 = por %p62, %p63
      %p65 = scmp.ne.s32.totalorder %s54, %s55
      %p66 = scmp.eq.s32.totalorder %s25, 0
      %p67 = por %p65, %p66
      %p68 = scmp.ne.s32.totalorder %s54, %s55
      %p69 = scmp.eq.s32.totalorder %s26, 1
      %p70 = por %p68, %p69
      %p72 = scmp.ne.s32.totalorder %s55, %s71
      %p73 = scmp.eq.s32.totalorder %s26, 0
      %p74 = por %p72, %p73
      %p75 = scmp.le.s32.totalorder 1, %s20
      %p76 = scmp.lt.s32.totalorder %s20, 3
      %p77 = pnand %p75, %p76
      %p78 = pneg %p77
      // Predicated region
      $region9: #{tpu_custom_call.1} parent=5 // pred_check
        _
      $region10: #{tpu_custom_call.1} parent=5 // pred_check_branch
        %80 = sbr.rel (%p77) target = $region12
      $region11: #{tpu_custom_call.1} parent=5 // pred_region
        %s81 = ssub.s32 %s20, 1
        // Predicated region
        $region13: #{tpu_custom_call.1} parent=11 // pred_check
          %p82 = pneg %p41
        $region14: #{tpu_custom_call.1} parent=11 // pred_check_branch
          %84 = sbr.rel (%p82) target = $region16
        $region15: #{tpu_custom_call.1} parent=11 // pred_region
          %86 = vsyncadd [#allocation5], 0
          %s87 = sshll.u32 %s1, 4
          %s88 = int_to_ptr.hbm [resolvable:$true] %s87
          %s89 = sshll.u32 [#allocation4], 4
          %s90 = int_to_ptr.vmem [resolvable:$true] %s89
          %95 = dma.hbm_to_vmem [thread:$0]  %s88, 512, %s90, [#allocation5], 128, 128, 8
        $region16: #{tpu_custom_call.1} parent=11 // pred_fallthru
          _
      $region12: #{tpu_custom_call.1} parent=5 // pred_fallthru
        _
      %p96 = scmp.lt.s32.totalorder %s20, 2
      // Predicated region
      $region17: #{tpu_custom_call.1} parent=5 // pred_check
        %p97 = pneg %p96
      $region18: #{tpu_custom_call.1} parent=5 // pred_check_branch
        %99 = sbr.rel (%p97) target = $region20
      $region19: #{tpu_custom_call.1} parent=5 // pred_region
        _
      $region20: #{tpu_custom_call.1} parent=5 // pred_fallthru
        _
      %p100 = scmp.le.s32.totalorder 1, %s20
      %p101 = scmp.lt.s32.totalorder %s20, 3
      %p102 = pnand %p100, %p101
      %p103 = pneg %p102
      // Predicated region
      $region21: #{tpu_custom_call.1} parent=5 // pred_check
        _
      $region22: #{tpu_custom_call.1} parent=5 // pred_check_branch
        %105 = sbr.rel (%p102) target = $region24
      $region23: #{tpu_custom_call.1} parent=5 // pred_region
        %s106 = ssub.s32 %s20, 1
        // Predicated region
        $region25: #{tpu_custom_call.1} parent=23 // pred_check
          %p107 = pneg %p41
        $region26: #{tpu_custom_call.1} parent=23 // pred_check_branch
          %109 = sbr.rel (%p107) target = $region28
        $region27: #{tpu_custom_call.1} parent=23 // pred_region
          %111 = dma.done [#allocation5], 512
        $region28: #{tpu_custom_call.1} parent=23 // pred_fallthru
          _
        %p112 = pneg %p41
        %p113 = pneg %p38
        %p114 = pneg %p67
        %p115 = pneg %p64
        %s116 = sand.u32 %s54, 1
        %s117 = scalar_lea.sflag [#allocation6], %s116
        %s118 = sand.u32 %s54, 1
        %s119 = smul.addr %s118, 32
        %s120 = scalar_lea.vmem [#allocation7], %s119
        %s121 = smul.u32 4, %s25
        %s122 = smul.u32 %s25, 4
        %s123 = sld [smem:[#allocation3 + %s122]]
        %p124 = scmp.ge.s32.totalorder %s123, 0
        %p125 = scmp.lt.s32.totalorder %s123, 4
        %p126 = pnand %p124, %p125
        %p127 = pneg %p126
        %s128 = scalar_select %p127, %s123, 0
        %s129 = smul.u32 %s128, 8
        %s130 = scalar_lea.vmem [#allocation4], %s129
        %v131 = vld [vmem:[%s130] sm:$0xff]
        %s132 = scalar_select %p127, 2.0, 0.0
        %v133 = vstv %s132
        %v134 = vmul.f32 %v131, %v133
        %135 = vst [vmem:[%s120] sm:$0xff] %v134
        %s136 = sadd.s32 %s122, 1
        %s137 = sld [smem:[#allocation3 + %s136]]
        %p138 = scmp.ge.s32.totalorder %s137, 0
        %p139 = scmp.lt.s32.totalorder %s137, 4
        %p140 = pnand %p138, %p139
        %p141 = pneg %p140
        %s142 = scalar_select %p141, %s137, 0
        %s143 = smul.u32 %s142, 8
        %s144 = scalar_lea.vmem [#allocation4], %s143
        %v145 = vld [vmem:[%s144] sm:$0xff]
        %s146 = scalar_select %p141, 2.0, 0.0
        %v147 = vstv %s146
        %v148 = vmul.f32 %v145, %v147
        %s149 = scalar_lea.vmem %s120, 8 [#allocation7]
        %150 = vst [vmem:[%s149] sm:$0xff] %v148
        %s151 = sadd.s32 %s122, 2
        %s152 = sld [smem:[#allocation3 + %s151]]
        %p153 = scmp.ge.s32.totalorder %s152, 0
        %p154 = scmp.lt.s32.totalorder %s152, 4
        %p155 = pnand %p153, %p154
        %p156 = pneg %p155
        %s157 = scalar_select %p156, %s152, 0
        %s158 = smul.u32 %s157, 8
        %s159 = scalar_lea.vmem [#allocation4], %s158
        %v160 = vld [vmem:[%s159] sm:$0xff]
        %s161 = scalar_select %p156, 2.0, 0.0
        %v162 = vstv %s161
        %v163 = vmul.f32 %v160, %v162
        %s164 = scalar_lea.vmem %s120, 16 [#allocation7]
        %165 = vst [vmem:[%s164] sm:$0xff] %v163
        %s166 = sadd.s32 %s122, 3
        %s167 = sld [smem:[#allocation3 + %s166]]
        %p168 = scmp.ge.s32.totalorder %s167, 0
        %p169 = scmp.lt.s32.totalorder %s167, 4
        %p170 = pnand %p168, %p169
        %p171 = pneg %p170
        %s172 = scalar_select %p171, %s167, 0
        %s173 = smul.u32 %s172, 8
        %s174 = scalar_lea.vmem [#allocation4], %s173
        %v175 = vld [vmem:[%s174] sm:$0xff]
        %s176 = scalar_select %p171, 2.0, 0.0
        %v177 = vstv %s176
        %v178 = vmul.f32 %v175, %v177
        %s179 = scalar_lea.vmem %s120, 24 [#allocation7]
        %180 = vst [vmem:[%s179] sm:$0xff] %v178
        %s181 = sand.u32 %s54, 1
        %s182 = scalar_lea.sflag [#allocation6], %s181
        %s183 = sand.u32 %s54, 1
        %s184 = smul.addr %s183, 32
        %s185 = scalar_lea.vmem [#allocation7], %s184
        // Predicated region
        $region29: #{tpu_custom_call.1} parent=23 // pred_check
          %p186 = pneg %p64
        $region30: #{tpu_custom_call.1} parent=23 // pred_check_branch
          %188 = sbr.rel (%p186) target = $region32
        $region31: #{tpu_custom_call.1} parent=23 // pred_region
          %s189 = smul.u32 4, %s25
          %191 = vsyncadd %s182, 0
          %s192 = smul.addr %s189, 8
          %s193 = scalar_lea.hbm %s2, %s192
          %s194 = sshll.u32 %s185, 4
          %s195 = int_to_ptr.vmem [resolvable:$true] %s194
          %s196 = sshll.u32 %s193, 4
          %s197 = int_to_ptr.hbm [resolvable:$true] %s196
          %202 = dma.vmem_to_hbm [thread:$0]  %s195, 512, %s197, %s182, 128, 128, 8
        $region32: #{tpu_custom_call.1} parent=23 // pred_fallthru
          _
      $region24: #{tpu_custom_call.1} parent=5 // pred_fallthru
        _
      %p203 = scmp.le.s32.totalorder 2, %s20
      // Predicated region
      $region33: #{tpu_custom_call.1} parent=5 // pred_check
        %p204 = pneg %p203
      $region34: #{tpu_custom_call.1} parent=5 // pred_check_branch
        %206 = sbr.rel (%p204) target = $region36
      $region35: #{tpu_custom_call.1} parent=5 // pred_region
        %s207 = ssub.s32 %s20, 2
        // Predicated region
        $region37: #{tpu_custom_call.1} parent=35 // pred_check
          %p208 = pneg %p70
        $region38: #{tpu_custom_call.1} parent=35 // pred_check_branch
          %210 = sbr.rel (%p208) target = $region40
        $region39: #{tpu_custom_call.1} parent=35 // pred_region
          %s211 = sand.u32 %s55, 1
          %s212 = scalar_lea.sflag [#allocation6], %s211
          %s213 = sand.u32 %s55, 1
          %s214 = smul.addr %s213, 32
          %s215 = scalar_lea.vmem [#allocation7], %s214
          %217 = dma.done %s212, 512
        $region40: #{tpu_custom_call.1} parent=35 // pred_fallthru
          _
      $region36: #{tpu_custom_call.1} parent=5 // pred_fallthru
        _
    $region6: #{tpu_custom_call.1} parent=1 // loop_footer
      %s24 = sadd.s32 1, %s20
    $region7: #{tpu_custom_call.1} parent=1 // loop_footer_branch
      %19 = sbr.rel target = $region3
    $region8: #{tpu_custom_call.1} parent=1 // loop_exit
      _
    %218 = vsyncpa [#allocation5], 1
    %s219 = scalar_lea.sflag [#allocation5], 1
    %220 = vsyncpa %s219, 1
    %221 = vsyncpa [#allocation6], 1
    %s222 = scalar_lea.sflag [#allocation6], 1
    %223 = vsyncpa %s222, 1

</llo_original>
